<compile_context>
chip_gen: v7x
topology: tpu7x:2x2x1
jax: 0.10.0
libtpu: 0.0.40
codegen_flags: <defaults>
</compile_context>

<pallas_src>
import numpy as np
import jax
import jax.numpy as jnp
from jax.experimental import pallas as pl
from jax.experimental.pallas import tpu as pltpu


def _round_up(n, m):
    return ((n + m - 1) // m) * m


def _gcn_kernel(x_ref, w_ref, b_ref, o_ref):
    # x_ref : [TM, N*F_in]        (node, feature) flattened on lanes (bf16)
    # w_ref : [N*F_in, N*F_out]   combined graph-conv + FC weight      (bf16)
    # b_ref : [1, N*F_out]        bias tiled per node                  (f32)
    # o_ref : [TM, N*F_out]       lane-dense output (unmasked vst)
    y = jnp.dot(x_ref[...], w_ref[...],
                preferred_element_type=jnp.float32) + b_ref[...]
    o_ref[...] = jnp.maximum(y, 0.0).astype(o_ref.dtype)


def gcn_forward(x, w_comb, bias_flat, *, tm_max=512, stream_dtype=jnp.bfloat16):
    """x: [B, T, n_nodes, n_in] -> [B, T, n_nodes, n_out]"""
    B, T, N, F_in = x.shape
    NF_in = N * F_in
    NF_out = w_comb.shape[1]
    F_out = NF_out // N
    M = B * T

    # Block size over the flattened (B*T) axis: no forced split for tiny M;
    # for large M use up to tm_max rows per step to amortize the ~0.35us/step
    # pipeline overhead and reach HBM roofline.
    tm = min(tm_max, _round_up(M, 8))
    m_pad = _round_up(M, tm)

    xm = x.reshape(M, NF_in).astype(stream_dtype)
    if m_pad != M:
        # Padded rows compute ReLU(b) and are sliced off below (<= 7 rows).
        xm = jnp.pad(xm, ((0, m_pad - M), (0, 0)))

    w = w_comb.astype(stream_dtype)
    b = bias_flat.astype(jnp.float32)
    out_dtype = x.dtype

    cost = pl.CostEstimate(
        flops=2 * m_pad * NF_in * NF_out,
        transcendentals=0,
        bytes_accessed=(xm.size * xm.dtype.itemsize
                        + w.size * w.dtype.itemsize
                        + b.size * b.dtype.itemsize
                        + m_pad * NF_out * jnp.dtype(out_dtype).itemsize),
    )

    # NOTE: w / b have constant index_maps, so the pipeline never re-fetches
    # them across grid steps.  At large M the "parallel" grid axis lets v7x
    # shard steps across its two TensorCores.
    out = pl.pallas_call(
        _gcn_kernel,
        out_shape=jax.ShapeDtypeStruct((m_pad, NF_out), out_dtype),
        grid_spec=pltpu.PrefetchScalarGridSpec(
            num_scalar_prefetch=0,
            grid=(m_pad // tm,),
            in_specs=[
                pl.BlockSpec((tm, NF_in), lambda i: (i, 0)),       # x block
                pl.BlockSpec((NF_in, NF_out), lambda i: (0, 0)),   # W_comb
                pl.BlockSpec((1, NF_out), lambda i: (0, 0)),       # bias
            ],
            out_specs=pl.BlockSpec((tm, NF_out), lambda i: (i, 0)),
        ),
        compiler_params=pltpu.CompilerParams(
            dimension_semantics=("parallel",)),
        cost_estimate=cost,
    )(xm, w, b)

    return out[:M].reshape(B, T, N, F_out)


def reference_forward(x_np, kNN_dict, sigma, W_fc, b_fc):
    """Literal numpy transcription of the PyTorch module."""
    B, T, N, F_in = x_np.shape
    conv_out = np.zeros_like(x_np)
    for i in range(N):
        neighbors, dists = kNN_dict[i]
        w = np.exp(-np.asarray(dists, np.float32) ** 2 / sigma ** 2)  # [k]==[n_in]
        # broadcast over the last (feature) axis, exactly like torch
        conv_out[:, :, i] = (w * x_np[:, :, neighbors]).sum(2)
    y = conv_out @ W_fc.T + b_fc
    return np.maximum(y, 0.0)


if __name__ == "__main__":
    # Small shapes consistent with the module's forward.
    B, T = 2, 12
    n_nodes = 16
    n_in = 8          # k == n_in is required by the PyTorch broadcast semantics
    n_out = 32
    k = n_in
    sigma = 0.6

    key = jax.random.PRNGKey(0)
    k_pos, k_x, k_w, k_b = jax.random.split(key, 4)

    # Deterministic synthetic kNN_dict from random 2-D node positions.
    pos = np.asarray(jax.random.uniform(k_pos, (n_nodes, 2), dtype=jnp.float32))
    dmat = np.sqrt(((pos[:, None, :] - pos[None, :, :]) ** 2).sum(-1))
    kNN_dict = {}
    for i in range(n_nodes):
        order = np.argsort(dmat[i])[:k]
        kNN_dict[i] = (order.tolist(), dmat[i, order].astype(np.float32).tolist())

    # Dense operators (host-side glue, plain numpy).
    A = np.zeros((n_nodes, n_nodes), np.float32)
    Wexp = np.zeros((n_nodes, n_in), np.float32)
    for i in range(n_nodes):
        neighbors, dists = kNN_dict[i]
        for p in neighbors:
            A[i, p] += 1.0
        Wexp[i] = np.exp(-np.asarray(dists, np.float32) ** 2 / sigma ** 2)

    # Deterministic fc (nn.Linear(n_in, n_out)) parameters.
    bound = 1.0 / np.sqrt(n_in)
    W_fc = np.asarray(jax.random.uniform(k_w, (n_out, n_in), minval=-bound,
                                         maxval=bound, dtype=jnp.float32))
    b_fc = np.asarray(jax.random.uniform(k_b, (n_out,), minval=-bound,
                                         maxval=bound, dtype=jnp.float32))

    # Combined weight (exact f32 host arithmetic):
    #   W_comb[p*F_in + f', j*F_out + g] = A[j,p] * Wexp[j,f'] * W_fc[g,f']
    # equivalent to (kron(A^T, I) * wexp_cols) @ kron(I, W_fc^T) but built
    # directly without materializing the kron factors.
    w_comb = np.einsum('jp,jf,gf->pfjg', A, Wexp, W_fc).reshape(
        n_nodes * n_in, n_nodes * n_out).astype(np.float32)
    bias_flat = np.tile(b_fc, n_nodes).reshape(1, n_nodes * n_out).astype(np.float32)

    # Input.
    x = jax.random.normal(k_x, (B, T, n_nodes, n_in), dtype=jnp.float32)

    out = gcn_forward(x, jnp.asarray(w_comb), jnp.asarray(bias_flat))
    out = jax.block_until_ready(out)

    ref = reference_forward(np.asarray(x), kNN_dict, sigma, W_fc, b_fc)
    # bf16-streamed operands with f32 accumulation -> ~1e-2-scale absolute
    # error on these magnitudes (same level as default MXU precision on f32).
    np.testing.assert_allclose(np.asarray(out), ref, rtol=2e-2, atol=5e-2)

    print("KERNEL_OK")
</pallas_src>

<mosaic_0001>
module attributes {stable_mosaic.version = 11 : i64} {
  func.func @_gcn_kernel(%arg0: i32, %arg1: memref<24x128xbf16, #tpu.memory_space<vmem>>, %arg2: memref<128x512xbf16, #tpu.memory_space<vmem>>, %arg3: memref<1x512xf32, #tpu.memory_space<vmem>>, %arg4: memref<24x512xf32, #tpu.memory_space<vmem>>) attributes {dimension_semantics = [#tpu.dimension_semantics<parallel>], iteration_bounds = array<i64: 1>, scalar_prefetch = 0 : i64, scratch_operands = 0 : i64, tpu.core_type = #tpu.core_type<tc>, window_params = [{transform_indices = @transform_0, window_bounds = array<i64: 24, 128>}, {pipeline_mode = #tpu.pipeline_mode<synchronous>, transform_indices = @transform_1, window_bounds = array<i64: 128, 512>}, {pipeline_mode = #tpu.pipeline_mode<synchronous>, transform_indices = @transform_2, window_bounds = array<i64: 1, 512>}, {transform_indices = @transform_3, window_bounds = array<i64: 24, 512>}]} {
    %c0 = arith.constant 0 : index
    %c0_0 = arith.constant 0 : index
    %0 = vector.load %arg1[%c0, %c0_0] : memref<24x128xbf16, #tpu.memory_space<vmem>>, vector<24x128xbf16>
    %c0_1 = arith.constant 0 : index
    %c0_2 = arith.constant 0 : index
    %1 = vector.load %arg2[%c0_1, %c0_2] : memref<128x512xbf16, #tpu.memory_space<vmem>>, vector<128x512xbf16>
    %cst = arith.constant dense<0.000000e+00> : vector<24x512xf32>
    %2 = tpu.matmul %0, %1, %cst {dimension_numbers = #tpu.dot_dimension_numbers<[1], [0], [0], [1], [0, 0, 1, 1], [], []>} : vector<24x128xbf16>, vector<128x512xbf16>, vector<24x512xf32> -> vector<24x512xf32>
    %c0_3 = arith.constant 0 : index
    %c0_4 = arith.constant 0 : index
    %3 = vector.load %arg3[%c0_3, %c0_4] : memref<1x512xf32, #tpu.memory_space<vmem>>, vector<1x512xf32>
    %4 = vector.broadcast %3 : vector<1x512xf32> to vector<24x512xf32>
    %5 = arith.addf %2, %4 : vector<24x512xf32>
    %cst_5 = arith.constant 0.000000e+00 : f32
    %6 = vector.broadcast %cst_5 : f32 to vector<24x512xf32>
    %7 = arith.maximumf %5, %6 : vector<24x512xf32>
    %c0_6 = arith.constant 0 : index
    %c0_7 = arith.constant 0 : index
    %8 = vector.load %arg4[%c0_6, %c0_7] : memref<24x512xf32, #tpu.memory_space<vmem>>, vector<24x512xf32>
    tpu.vector_store %arg4[%c0_6, %c0_7], %7 {strides = array<i32>} : memref<24x512xf32, #tpu.memory_space<vmem>>, vector<24x512xf32>,
    return
  }
  func.func @transform_0(%arg0: i32) -> (i32, i32) {
    %c0_i32 = arith.constant 0 : i32
    %c0_i32_0 = arith.constant 0 : i32
    return %arg0, %c0_i32 : i32, i32
  }
  func.func @transform_1(%arg0: i32) -> (i32, i32) {
    %c0_i32 = arith.constant 0 : i32
    %c0_i32_0 = arith.constant 0 : i32
    %c0_i32_1 = arith.constant 0 : i32
    return %c0_i32, %c0_i32_0 : i32, i32
  }
  func.func @transform_2(%arg0: i32) -> (i32, i32) {
    %c0_i32 = arith.constant 0 : i32
    %c0_i32_0 = arith.constant 0 : i32
    %c0_i32_1 = arith.constant 0 : i32
    return %c0_i32, %c0_i32_0 : i32, i32
  }
  func.func @transform_3(%arg0: i32) -> (i32, i32) {
    %c0_i32 = arith.constant 0 : i32
    %c0_i32_0 = arith.constant 0 : i32
    return %arg0, %c0_i32 : i32, i32
  }
}

</mosaic_0001>

<llo_original>
// kernel: tpu_custom_call.1
$region0: #{tpu_custom_call.1}
  #allocation0 [shape = 'u32[]', space=smem, size = 0x4, offset = 0x4, fixed_abs, tag = 'smem constant byte address 0x4 - core index']
  #allocation1 [shape = 'u32[144,128]{1,0:T(1,128)}', space=vmem, size = 0x12000, scoped, tag = 'internal scratch']
  %s0 = inlined_call_operand.hbm [shape: bf16[24,128], index: 0, kind: input, shape index: {}]
  %s1 = inlined_call_operand.hbm [shape: bf16[128,512], index: 1, kind: input, shape index: {}]
  %s2 = inlined_call_operand.vmem [shape: f32[1,512], index: 2, kind: input, shape index: {}]
  %s3 = inlined_call_operand.hbm [shape: f32[24,512], index: 3, kind: output, shape index: {}]
  %s4 = sld [smem:[#allocation0]]
  $region30: #{tpu_custom_call.1} parent=0
    _
  %s6 = ssub.s32 1, %s4
  %s7 = scalar_select 0, %s6, %s4
  $region1: #{tpu_custom_call.1} parent=0
    #allocation2 [shape = 'u8[6144]{0}', space=vmem, size = 0x1800, scoped, tag = 'input window, operand 0, single buffered']
    #allocation3 [shape = 's32[1]{0}', space=sflag, size = 0x4, scoped, tag = 'scoped memory for tpu_custom_call.1']
    #allocation4 [shape = 's32[1]{0}', space=sflag, size = 0x4, scoped, tag = 'scoped memory for tpu_custom_call.1']
    #allocation5 [shape = 'u8[131072]{0}', space=vmem, size = 0x20000, scoped, tag = 'input window, operand 1, single buffered']
    #allocation6 [shape = 's32[1]{0}', space=sflag, size = 0x4, scoped, tag = 'scoped memory for tpu_custom_call.1']
    #allocation7 [shape = 'u8[49152]{0}', space=vmem, size = 0xc000, scoped, tag = 'output window, operand 0, single buffered']
    %8 = vsyncpa [#allocation3], 0
    %9 = vsyncpa [#allocation6], 0
    %10 = vsyncpa [#allocation4], 0
    // Predicated region
    $region2: #{tpu_custom_call.1} parent=1 // pred_check
      _
    $region3: #{tpu_custom_call.1} parent=1 // pred_check_branch
      %12 = sbr.rel (0) target = $region5
    $region4: #{tpu_custom_call.1} parent=1 // pred_region
      %s14 = ssub.s32 192, 192
      %15 = vsyncadd [#allocation3], %s14
      %s16 = sshll.u32 [#allocation2], 4
      %s17 = int_to_ptr.vmem [resolvable:$true] %s16
      %22 = dma.hbm_to_vmem [thread:$0]  %s0, 192, %s17, [#allocation3], 64, 64, 4
    $region5: #{tpu_custom_call.1} parent=1 // pred_fallthru
      _
    // Predicated region
    $region6: #{tpu_custom_call.1} parent=1 // pred_check
      _
    $region7: #{tpu_custom_call.1} parent=1 // pred_check_branch
      %24 = sbr.rel (0) target = $region9
    $region8: #{tpu_custom_call.1} parent=1 // pred_region
      %s26 = ssub.s32 4096, 4096
      %27 = vsyncadd [#allocation6], %s26
      %s28 = sshll.u32 [#allocation5], 4
      %s29 = int_to_ptr.vmem [resolvable:$true] %s28
      %34 = dma.hbm_to_vmem [thread:$0]  %s1, 4096, %s29, [#allocation6], 256, 256, 16
    $region9: #{tpu_custom_call.1} parent=1 // pred_fallthru
      _
    // Predicated region
    $region10: #{tpu_custom_call.1} parent=1 // pred_check
      _
    $region11: #{tpu_custom_call.1} parent=1 // pred_check_branch
      %36 = sbr.rel (0) target = $region13
    $region12: #{tpu_custom_call.1} parent=1 // pred_region
      _
    $region13: #{tpu_custom_call.1} parent=1 // pred_fallthru
      _
    // Predicated region
    $region14: #{tpu_custom_call.1} parent=1 // pred_check
      _
    $region15: #{tpu_custom_call.1} parent=1 // pred_check_branch
      %38 = sbr.rel (0) target = $region17
    $region16: #{tpu_custom_call.1} parent=1 // pred_region
      %39 = dma.done [#allocation3], 192
    $region17: #{tpu_custom_call.1} parent=1 // pred_fallthru
      _
    // Predicated region
    $region18: #{tpu_custom_call.1} parent=1 // pred_check
      _
    $region19: #{tpu_custom_call.1} parent=1 // pred_check_branch
      %41 = sbr.rel (0) target = $region21
    $region20: #{tpu_custom_call.1} parent=1 // pred_region
      %42 = dma.done [#allocation6], 4096
    $region21: #{tpu_custom_call.1} parent=1 // pred_fallthru
      _
    %v44 = vld [vmem:[#allocation2] sm:$0xf]
    %v45 = vld [vmem:[#allocation2 + $0x4] sm:$0xf]
    %v46 = vld [vmem:[#allocation2 + $0x8] sm:$0xf]
    %v47 = vld [vmem:[#allocation5] sm:$0xff]
    %v48 = vld [vmem:[#allocation5 + $0x8] sm:$0xff]
    %v49 = vld [vmem:[#allocation5 + $0x10] sm:$0xff]
    %v50 = vld [vmem:[#allocation5 + $0x18] sm:$0xff]
    %v51 = vld [vmem:[#allocation5 + $0x20] sm:$0xff]
    %v52 = vld [vmem:[#allocation5 + $0x28] sm:$0xff]
    %v53 = vld [vmem:[#allocation5 + $0x30] sm:$0xff]
    %v54 = vld [vmem:[#allocation5 + $0x38] sm:$0xff]
    %v55 = vld [vmem:[#allocation5 + $0x40] sm:$0xff]
    %v56 = vld [vmem:[#allocation5 + $0x48] sm:$0xff]
    %v57 = vld [vmem:[#allocation5 + $0x50] sm:$0xff]
    %v58 = vld [vmem:[#allocation5 + $0x58] sm:$0xff]
    %v59 = vld [vmem:[#allocation5 + $0x60] sm:$0xff]
    %v60 = vld [vmem:[#allocation5 + $0x68] sm:$0xff]
    %v61 = vld [vmem:[#allocation5 + $0x70] sm:$0xff]
    %v62 = vld [vmem:[#allocation5 + $0x78] sm:$0xff]
    %v63 = vld [vmem:[#allocation5 + $0x80] sm:$0xff]
    %v64 = vld [vmem:[#allocation5 + $0x88] sm:$0xff]
    %v65 = vld [vmem:[#allocation5 + $0x90] sm:$0xff]
    %v66 = vld [vmem:[#allocation5 + $0x98] sm:$0xff]
    %v67 = vld [vmem:[#allocation5 + $0xa0] sm:$0xff]
    %v68 = vld [vmem:[#allocation5 + $0xa8] sm:$0xff]
    %v69 = vld [vmem:[#allocation5 + $0xb0] sm:$0xff]
    %v70 = vld [vmem:[#allocation5 + $0xb8] sm:$0xff]
    %v71 = vld [vmem:[#allocation5 + $0xc0] sm:$0xff]
    %v72 = vld [vmem:[#allocation5 + $0xc8] sm:$0xff]
    %v73 = vld [vmem:[#allocation5 + $0xd0] sm:$0xff]
    %v74 = vld [vmem:[#allocation5 + $0xd8] sm:$0xff]
    %v75 = vld [vmem:[#allocation5 + $0xe0] sm:$0xff]
    %v76 = vld [vmem:[#allocation5 + $0xe8] sm:$0xff]
    %v77 = vld [vmem:[#allocation5 + $0xf0] sm:$0xff]
    %v78 = vld [vmem:[#allocation5 + $0xf8] sm:$0xff]
    %v79 = vld [vmem:[%s2] sm:$0xf]
    %v81 = vlaneseq
    %v82 = vshrl.u32 %v81, 7
    %v83 = vsub.s32 0, %v82
    %v84 = vrot.slane %v79, %v83
    %v85 = vlaneseq
    %v86 = vshrl.u32 %v85, 7
    %v87 = vsub.s32 1, %v86
    %v88 = vrot.slane %v79, %v87
    %v89 = vlaneseq
    %v90 = vshrl.u32 %v89, 7
    %v91 = vsub.s32 2, %v90
    %v92 = vrot.slane %v79, %v91
    %v93 = vlaneseq
    %v94 = vshrl.u32 %v93, 7
    %v95 = vsub.s32 3, %v94
    %v96 = vrot.slane %v79, %v95
    %v104 = vunpack.c.l.b16 %v44
    %v105 = vunpack.c.l.b16 %v45
    %v106 = vunpack.c.l.b16 %v46
    %v107 = vpack.c.b16 %v105, %v104
    %v108 = vpack.c.b16 %v106, %v106
    %v143 = vunpack.c.l.b16 %v47
    %v144 = vunpack.c.h.b16 %v47
    %v145 = vunpack.c.l.b16 %v48
    %v146 = vunpack.c.h.b16 %v48
    %v147 = vunpack.c.l.b16 %v49
    %v148 = vunpack.c.h.b16 %v49
    %v149 = vunpack.c.l.b16 %v50
    %v150 = vunpack.c.h.b16 %v50
    %v151 = vunpack.c.l.b16 %v51
    %v152 = vunpack.c.h.b16 %v51
    %v153 = vunpack.c.l.b16 %v52
    %v154 = vunpack.c.h.b16 %v52
    %v155 = vunpack.c.l.b16 %v53
    %v156 = vunpack.c.h.b16 %v53
    %v157 = vunpack.c.l.b16 %v54
    %v158 = vunpack.c.h.b16 %v54
    %v159 = vunpack.c.l.b16 %v55
    %v160 = vunpack.c.h.b16 %v55
    %v161 = vunpack.c.l.b16 %v56
    %v162 = vunpack.c.h.b16 %v56
    %v163 = vunpack.c.l.b16 %v57
    %v164 = vunpack.c.h.b16 %v57
    %v165 = vunpack.c.l.b16 %v58
    %v166 = vunpack.c.h.b16 %v58
    %v167 = vunpack.c.l.b16 %v59
    %v168 = vunpack.c.h.b16 %v59
    %v169 = vunpack.c.l.b16 %v60
    %v170 = vunpack.c.h.b16 %v60
    %v171 = vunpack.c.l.b16 %v61
    %v172 = vunpack.c.h.b16 %v61
    %v173 = vunpack.c.l.b16 %v62
    %v174 = vunpack.c.h.b16 %v62
    %v175 = vunpack.c.l.b16 %v63
    %v176 = vunpack.c.h.b16 %v63
    %v177 = vunpack.c.l.b16 %v64
    %v178 = vunpack.c.h.b16 %v64
    %v179 = vunpack.c.l.b16 %v65
    %v180 = vunpack.c.h.b16 %v65
    %v181 = vunpack.c.l.b16 %v66
    %v182 = vunpack.c.h.b16 %v66
    %v183 = vunpack.c.l.b16 %v67
    %v184 = vunpack.c.h.b16 %v67
    %v185 = vunpack.c.l.b16 %v68
    %v186 = vunpack.c.h.b16 %v68
    %v187 = vunpack.c.l.b16 %v69
    %v188 = vunpack.c.h.b16 %v69
    %v189 = vunpack.c.l.b16 %v70
    %v190 = vunpack.c.h.b16 %v70
    %v191 = vunpack.c.l.b16 %v71
    %v192 = vunpack.c.h.b16 %v71
    %v193 = vunpack.c.l.b16 %v72
    %v194 = vunpack.c.h.b16 %v72
    %v195 = vunpack.c.l.b16 %v73
    %v196 = vunpack.c.h.b16 %v73
    %v197 = vunpack.c.l.b16 %v74
    %v198 = vunpack.c.h.b16 %v74
    %v199 = vunpack.c.l.b16 %v75
    %v200 = vunpack.c.h.b16 %v75
    %v201 = vunpack.c.l.b16 %v76
    %v202 = vunpack.c.h.b16 %v76
    %v203 = vunpack.c.l.b16 %v77
    %v204 = vunpack.c.h.b16 %v77
    %v205 = vunpack.c.l.b16 %v78
    %v206 = vunpack.c.h.b16 %v78
    %v207 = vpack.c.b16 %v147, %v143
    %v208 = vpack.c.b16 %v148, %v144
    %v209 = vpack.c.b16 %v149, %v145
    %v210 = vpack.c.b16 %v150, %v146
    %v211 = vpack.c.b16 %v155, %v151
    %v212 = vpack.c.b16 %v156, %v152
    %v213 = vpack.c.b16 %v157, %v153
    %v214 = vpack.c.b16 %v158, %v154
    %v215 = vpack.c.b16 %v163, %v159
    %v216 = vpack.c.b16 %v164, %v160
    %v217 = vpack.c.b16 %v165, %v161
    %v218 = vpack.c.b16 %v166, %v162
    %v219 = vpack.c.b16 %v171, %v167
    %v220 = vpack.c.b16 %v172, %v168
    %v221 = vpack.c.b16 %v173, %v169
    %v222 = vpack.c.b16 %v174, %v170
    %v223 = vpack.c.b16 %v179, %v175
    %v224 = vpack.c.b16 %v180, %v176
    %v225 = vpack.c.b16 %v181, %v177
    %v226 = vpack.c.b16 %v182, %v178
    %v227 = vpack.c.b16 %v187, %v183
    %v228 = vpack.c.b16 %v188, %v184
    %v229 = vpack.c.b16 %v189, %v185
    %v230 = vpack.c.b16 %v190, %v186
    %v231 = vpack.c.b16 %v195, %v191
    %v232 = vpack.c.b16 %v196, %v192
    %v233 = vpack.c.b16 %v197, %v193
    %v234 = vpack.c.b16 %v198, %v194
    %v235 = vpack.c.b16 %v203, %v199
    %v236 = vpack.c.b16 %v204, %v200
    %v237 = vpack.c.b16 %v205, %v201
    %v238 = vpack.c.b16 %v206, %v202
    %271 = vmatprep.subr.bf16.mxu0 %v208
    %272 = vmatpush1.bf16.msra.mxu0 %v207
    %273 = vmatprep.subr.bf16.mxu0 %v212
    %274 = vmatpush1.bf16.msra.mxu0 %v211
    %275 = vmatprep.subr.bf16.mxu0 %v216
    %276 = vmatpush1.bf16.msra.mxu0 %v215
    %277 = vmatprep.subr.bf16.mxu0 %v220
    %278 = vmatpush1.bf16.msra.mxu0 %v219
    %279 = vmatprep.subr.bf16.mxu0 %v224
    %280 = vmatpush1.bf16.msra.mxu0 %v223
    %281 = vmatprep.subr.bf16.mxu0 %v228
    %282 = vmatpush1.bf16.msra.mxu0 %v227
    %283 = vmatprep.subr.bf16.mxu0 %v232
    %284 = vmatpush1.bf16.msra.mxu0 %v231
    %285 = vmatprep.subr.bf16.mxu0 %v236
    %286 = vmatpush1.bf16.msra.mxu0 %v235
    %287 = vmatprep.subr.bf16.mxu0 0
    %288 = vmatpush1.bf16.msra.mxu0 0
    %289 = vmatprep.subr.bf16.mxu0 0
    %290 = vmatpush1.bf16.msra.mxu0 0
    %291 = vmatprep.subr.bf16.mxu0 0
    %292 = vmatpush1.bf16.msra.mxu0 0
    %293 = vmatprep.subr.bf16.mxu0 0
    %294 = vmatpush1.bf16.msra.mxu0 0
    %295 = vmatprep.subr.bf16.mxu0 0
    %296 = vmatpush1.bf16.msra.mxu0 0
    %297 = vmatprep.subr.bf16.mxu0 0
    %298 = vmatpush1.bf16.msra.mxu0 0
    %299 = vmatprep.subr.bf16.mxu0 0
    %300 = vmatpush1.bf16.msra.mxu0 0
    %301 = vmatprep.subr.bf16.mxu0 0
    %302 = vmatpush1.bf16.msra.mxu0 0
    %303 = vmatprep.mubr.bf16.mxu0 0
    %304 = vmatmul.mubr.bf16.gmra.mrb[0].mxu0 %v107
    %v305 = vpop.f32.mrb[0].mxu0
    %v306 = vadd.f32 %v84, %v305
    %v307 = vpop.f32.mrb[0].mxu0
    %v308 = vadd.f32 %v88, %v307
    %v309 = vpop.f32.mrb[0].mxu0
    %v310 = vadd.f32 %v84, %v309
    %v311 = vpop.f32.mrb[0].mxu0
    %v312 = vadd.f32 %v88, %v311
    %313 = vmatprep.mubr.bf16.mxu0 0
    %314 = vmatmul.mubr.bf16.gmra.mrb[0].mxu0 %v108
    %v315 = vpop.f32.mrb[0].mxu0
    %v316 = vadd.f32 %v84, %v315
    %v317 = vpop.f32.mrb[0].mxu0
    %v318 = vadd.f32 %v88, %v317
    %v319 = vpop.f32.mrb[0].mxu0
    %v320 = vpop.f32.mrb[0].mxu0
    %321 = vdwg.mxu0
    %322 = vmatprep.subr.bf16.mxu0 %v210
    %323 = vmatpush1.bf16.msra.mxu0 %v209
    %324 = vmatprep.subr.bf16.mxu0 %v214
    %325 = vmatpush1.bf16.msra.mxu0 %v213
    %326 = vmatprep.subr.bf16.mxu0 %v218
    %327 = vmatpush1.bf16.msra.mxu0 %v217
    %328 = vmatprep.subr.bf16.mxu0 %v222
    %329 = vmatpush1.bf16.msra.mxu0 %v221
    %330 = vmatprep.subr.bf16.mxu0 %v226
    %331 = vmatpush1.bf16.msra.mxu0 %v225
    %332 = vmatprep.subr.bf16.mxu0 %v230
    %333 = vmatpush1.bf16.msra.mxu0 %v229
    %334 = vmatprep.subr.bf16.mxu0 %v234
    %335 = vmatpush1.bf16.msra.mxu0 %v233
    %336 = vmatprep.subr.bf16.mxu0 %v238
    %337 = vmatpush1.bf16.msra.mxu0 %v237
    %338 = vmatprep.subr.bf16.mxu0 0
    %339 = vmatpush1.bf16.msra.mxu0 0
    %340 = vmatprep.subr.bf16.mxu0 0
    %341 = vmatpush1.bf16.msra.mxu0 0
    %342 = vmatprep.subr.bf16.mxu0 0
    %343 = vmatpush1.bf16.msra.mxu0 0
    %344 = vmatprep.subr.bf16.mxu0 0
    %345 = vmatpush1.bf16.msra.mxu0 0
    %346 = vmatprep.subr.bf16.mxu0 0
    %347 = vmatpush1.bf16.msra.mxu0 0
    %348 = vmatprep.subr.bf16.mxu0 0
    %349 = vmatpush1.bf16.msra.mxu0 0
    %350 = vmatprep.subr.bf16.mxu0 0
    %351 = vmatpush1.bf16.msra.mxu0 0
    %352 = vmatprep.subr.bf16.mxu0 0
    %353 = vmatpush1.bf16.msra.mxu0 0
    %354 = vmatprep.mubr.bf16.mxu0 0
    %355 = vmatmul.mubr.bf16.gmra.mrb[0].mxu0 %v107
    %v356 = vpop.f32.mrb[0].mxu0
    %v357 = vadd.f32 %v92, %v356
    %v358 = vpop.f32.mrb[0].mxu0
    %v359 = vadd.f32 %v96, %v358
    %v360 = vpop.f32.mrb[0].mxu0
    %v361 = vadd.f32 %v92, %v360
    %v362 = vpop.f32.mrb[0].mxu0
    %v363 = vadd.f32 %v96, %v362
    %364 = vmatprep.mubr.bf16.mxu0 0
    %365 = vmatmul.mubr.bf16.gmra.mrb[0].mxu0 %v108
    %v366 = vpop.f32.mrb[0].mxu0
    %v367 = vadd.f32 %v92, %v366
    %v368 = vpop.f32.mrb[0].mxu0
    %v369 = vadd.f32 %v96, %v368
    %v370 = vpop.f32.mrb[0].mxu0
    %v371 = vpop.f32.mrb[0].mxu0
    %372 = vdwg.mxu0
    %v373 = vmax.f32 %v306, 0.0
    %v374 = vmax.f32 %v308, 0.0
    %v375 = vmax.f32 %v357, 0.0
    %v376 = vmax.f32 %v359, 0.0
    %v377 = vmax.f32 %v310, 0.0
    %v378 = vmax.f32 %v312, 0.0
    %v379 = vmax.f32 %v361, 0.0
    %v380 = vmax.f32 %v363, 0.0
    %v381 = vmax.f32 %v316, 0.0
    %v382 = vmax.f32 %v318, 0.0
    %v383 = vmax.f32 %v367, 0.0
    %v384 = vmax.f32 %v369, 0.0
    %385 = vst [vmem:[#allocation7] sm:$0xff] %v373
    %386 = vst [vmem:[#allocation7 + $0x8] sm:$0xff] %v374
    %387 = vst [vmem:[#allocation7 + $0x10] sm:$0xff] %v375
    %388 = vst [vmem:[#allocation7 + $0x18] sm:$0xff] %v376
    %389 = vst [vmem:[#allocation7 + $0x20] sm:$0xff] %v377
    %390 = vst [vmem:[#allocation7 + $0x28] sm:$0xff] %v378
    %391 = vst [vmem:[#allocation7 + $0x30] sm:$0xff] %v379
    %392 = vst [vmem:[#allocation7 + $0x38] sm:$0xff] %v380
    %393 = vst [vmem:[#allocation7 + $0x40] sm:$0xff] %v381
    %394 = vst [vmem:[#allocation7 + $0x48] sm:$0xff] %v382
    %395 = vst [vmem:[#allocation7 + $0x50] sm:$0xff] %v383
    %396 = vst [vmem:[#allocation7 + $0x58] sm:$0xff] %v384
    // Predicated region
    $region22: #{tpu_custom_call.1} parent=1 // pred_check
      _
    $region23: #{tpu_custom_call.1} parent=1 // pred_check_branch
      %398 = sbr.rel (0) target = $region25
    $region24: #{tpu_custom_call.1} parent=1 // pred_region
      %s400 = ssub.s32 1536, 1536
      %401 = vsyncadd [#allocation4], %s400
      %s402 = sshll.u32 [#allocation7], 4
      %s403 = int_to_ptr.vmem [resolvable:$true] %s402
      %408 = dma.vmem_to_hbm [thread:$0]  %s403, 1536, %s3, [#allocation4], 512, 512, 32
    $region25: #{tpu_custom_call.1} parent=1 // pred_fallthru
      _
    // Predicated region
    $region26: #{tpu_custom_call.1} parent=1 // pred_check
      _
    $region27: #{tpu_custom_call.1} parent=1 // pred_check_branch
      %410 = sbr.rel (0) target = $region29
    $region28: #{tpu_custom_call.1} parent=1 // pred_region
      %411 = dma.done [#allocation4], 1536
    $region29: #{tpu_custom_call.1} parent=1 // pred_fallthru
      _
    %412 = vsyncpa [#allocation3], 1
    %413 = vsyncpa [#allocation6], 1
    %414 = vsyncpa [#allocation4], 1

</llo_original>
